<compile_context>
chip_gen: v7x
topology: tpu7x:2x2x1
jax: 0.10.0
libtpu: 0.0.40
codegen_flags: <defaults>
</compile_context>

<pallas_src>
import functools

import jax
import jax.numpy as jnp
from jax.experimental import pallas as pl
from jax.experimental.pallas import tpu as pltpu

EPS = 1e-5


def _pick_tile(mr):
    """Largest row-tile that is a multiple of 8, divides mr, and is <= 512."""
    for cand in (512, 256, 128, 64, 32, 16, 8):
        if mr % cand == 0:
            return cand
    return mr  # full-extent block is always legal


def _stats_kernel(x_ref, gamma_ref, beta_ref, scale_ref, shift_ref,
                  sum_ref, sumsq_ref, *, n_feat, fold, inv_count):
    t = pl.program_id(0)

    @pl.when(t == 0)
    def _():
        sum_ref[...] = jnp.zeros_like(sum_ref)
        sumsq_ref[...] = jnp.zeros_like(sumsq_ref)

    # Single pass: accumulate per-lane sum and sum-of-squares in f32.
    x = x_ref[...].astype(jnp.float32)
    sum_ref[...] += jnp.sum(x, axis=0, keepdims=True)
    sumsq_ref[...] += jnp.sum(x * x, axis=0, keepdims=True)

    @pl.when(t == pl.num_programs(0) - 1)
    def _():
        s = sum_ref[...]
        ss = sumsq_ref[...]
        # Fold the `fold` lane-groups onto each other: after summing all rotations by
        # multiples of n_feat, every lane c holds the total for feature c % n_feat
        # (already broadcast across the 128 lanes).  XLU work, done once.
        s_tot = s
        ss_tot = ss
        for g in range(1, fold):
            s_tot = s_tot + pltpu.roll(s, g * n_feat, axis=1)
            ss_tot = ss_tot + pltpu.roll(ss, g * n_feat, axis=1)
        mean = s_tot * inv_count
        var = ss_tot * inv_count - mean * mean          # biased variance
        inv_std = jax.lax.rsqrt(var + EPS)
        scale = gamma_ref[...] * inv_std                # per-lane scale
        scale_ref[...] = scale
        shift_ref[...] = beta_ref[...] - mean * scale   # per-lane shift


def _apply_kernel(x_ref, scale_ref, shift_ref, o_ref):
    x = x_ref[...].astype(jnp.float32)
    o_ref[...] = (x * scale_ref[...] + shift_ref[...]).astype(o_ref.dtype)


@functools.partial(jax.jit, static_argnames=("n_feat",))
def bnview_forward(x, gamma, beta, *, n_feat):
    """x: any shape (B, ...) with prod(...) divisible by n_feat."""
    x_shape = x.shape
    assert x.size % n_feat == 0, "flattened size must be divisible by n_feat"
    M = x.size // n_feat                       # = B * L : count per feature

    # Lane-dense reinterpretation: fold rows so the last dim is 128 lanes wide.
    if n_feat < 128 and 128 % n_feat == 0 and M % (128 // n_feat) == 0:
        fold = 128 // n_feat
    else:
        fold = 1                               # fallback: keep n_feat as the lane dim
    lanes = n_feat * fold
    Mr = M // fold

    xm = x.reshape(Mr, lanes)                  # pure row-major reinterpretation

    gamma_l = jnp.tile(gamma.reshape(1, n_feat).astype(jnp.float32), (1, fold))
    beta_l = jnp.tile(beta.reshape(1, n_feat).astype(jnp.float32), (1, fold))

    tm = _pick_tile(Mr)
    num_tiles = Mr // tm

    # Pass 1: per-feature statistics -> per-lane (scale, shift).
    scale, shift = pl.pallas_call(
        functools.partial(_stats_kernel, n_feat=n_feat, fold=fold,
                          inv_count=1.0 / float(M)),
        out_shape=(jax.ShapeDtypeStruct((1, lanes), jnp.float32),
                   jax.ShapeDtypeStruct((1, lanes), jnp.float32)),
        grid=(num_tiles,),
        in_specs=[
            pl.BlockSpec((tm, lanes), lambda t: (t, 0)),
            pl.BlockSpec((1, lanes), lambda t: (0, 0)),
            pl.BlockSpec((1, lanes), lambda t: (0, 0)),
        ],
        out_specs=(
            pl.BlockSpec((1, lanes), lambda t: (0, 0)),
            pl.BlockSpec((1, lanes), lambda t: (0, 0)),
        ),
        scratch_shapes=[pltpu.VMEM((1, lanes), jnp.float32),
                        pltpu.VMEM((1, lanes), jnp.float32)],
        compiler_params=pltpu.CompilerParams(
            dimension_semantics=("arbitrary",)),
    )(xm, gamma_l, beta_l)

    # Pass 2: y = x * scale + shift (row tiles are independent -> "parallel").
    out = pl.pallas_call(
        _apply_kernel,
        out_shape=jax.ShapeDtypeStruct((Mr, lanes), x.dtype),
        grid=(num_tiles,),
        in_specs=[
            pl.BlockSpec((tm, lanes), lambda t: (t, 0)),
            pl.BlockSpec((1, lanes), lambda t: (0, 0)),
            pl.BlockSpec((1, lanes), lambda t: (0, 0)),
        ],
        out_specs=pl.BlockSpec((tm, lanes), lambda t: (t, 0)),
        compiler_params=pltpu.CompilerParams(
            dimension_semantics=("parallel",)),
    )(xm, scale, shift)

    return out.reshape(x_shape)


def _reference(x, gamma, beta, n_feat):
    x_shape = x.shape
    xm = x.reshape(-1, n_feat).astype(jnp.float32)
    mean = jnp.mean(xm, axis=0, keepdims=True)
    var = jnp.mean((xm - mean) ** 2, axis=0, keepdims=True)
    y = (xm - mean) / jnp.sqrt(var + EPS)
    y = y * gamma.reshape(1, n_feat) + beta.reshape(1, n_feat)
    return y.reshape(x_shape).astype(x.dtype)


if __name__ == "__main__":
    key = jax.random.PRNGKey(0)
    kx, kg, kb = jax.random.split(key, 3)

    n_feat = 32
    # NCHW-like input: (B=2, C=4, H=16, W=16); C*H*W = 1024 is divisible by n_feat=32.
    x = jax.random.normal(kx, (2, 4, 16, 16), dtype=jnp.float32)

    # PyTorch default init is gamma=1, beta=0; perturb so the affine path is exercised.
    gamma = 1.0 + 0.1 * jax.random.normal(kg, (n_feat,), dtype=jnp.float32)
    beta = 0.1 * jax.random.normal(kb, (n_feat,), dtype=jnp.float32)

    out = bnview_forward(x, gamma, beta, n_feat=n_feat)
    out = jax.block_until_ready(out)

    ref = _reference(x, gamma, beta, n_feat)
    assert out.shape == x.shape and out.dtype == x.dtype
    assert jnp.allclose(out, ref, atol=1e-4, rtol=1e-4), "mismatch vs reference"

    print("KERNEL_OK")
</pallas_src>

<mosaic_0001>
module attributes {stable_mosaic.version = 11 : i64} {
  func.func @_stats_kernel(%arg0: i32, %arg1: memref<16x128xf32, #tpu.memory_space<vmem>>, %arg2: memref<1x128xf32, #tpu.memory_space<vmem>>, %arg3: memref<1x128xf32, #tpu.memory_space<vmem>>, %arg4: memref<1x128xf32, #tpu.memory_space<vmem>>, %arg5: memref<1x128xf32, #tpu.memory_space<vmem>>, %arg6: memref<1x128xf32, #tpu.memory_space<vmem>>, %arg7: memref<1x128xf32, #tpu.memory_space<vmem>>) attributes {dimension_semantics = [#tpu.dimension_semantics<arbitrary>], iteration_bounds = array<i64: 1>, scalar_prefetch = 0 : i64, scratch_operands = 2 : i64, tpu.core_type = #tpu.core_type<tc>, window_params = [{transform_indices = @transform_0, window_bounds = array<i64: 16, 128>}, {pipeline_mode = #tpu.pipeline_mode<synchronous>, transform_indices = @transform_1, window_bounds = array<i64: 1, 128>}, {pipeline_mode = #tpu.pipeline_mode<synchronous>, transform_indices = @transform_2, window_bounds = array<i64: 1, 128>}, {pipeline_mode = #tpu.pipeline_mode<synchronous>, transform_indices = @transform_3, window_bounds = array<i64: 1, 128>}, {pipeline_mode = #tpu.pipeline_mode<synchronous>, transform_indices = @transform_4, window_bounds = array<i64: 1, 128>}]} {
    %c0_i32 = arith.constant 0 : i32
    %0 = arith.cmpi eq, %arg0, %c0_i32 : i32
    %1 = arith.extui %0 : i1 to i32
    %c0_i32_0 = arith.constant 0 : i32
    %2 = arith.cmpi ne, %1, %c0_i32_0 : i32
    scf.if %2 {
      %cst_13 = arith.constant 0.000000e+00 : f32
      %18 = vector.broadcast %cst_13 : f32 to vector<1x128xf32>
      %c0_14 = arith.constant 0 : index
      %c0_15 = arith.constant 0 : index
      %19 = vector.load %arg6[%c0_14, %c0_15] : memref<1x128xf32, #tpu.memory_space<vmem>>, vector<1x128xf32>
      tpu.vector_store %arg6[%c0_14, %c0_15], %18 {strides = array<i32>} : memref<1x128xf32, #tpu.memory_space<vmem>>, vector<1x128xf32>,
      %cst_16 = arith.constant 0.000000e+00 : f32
      %20 = vector.broadcast %cst_16 : f32 to vector<1x128xf32>
      %c0_17 = arith.constant 0 : index
      %c0_18 = arith.constant 0 : index
      %21 = vector.load %arg7[%c0_17, %c0_18] : memref<1x128xf32, #tpu.memory_space<vmem>>, vector<1x128xf32>
      tpu.vector_store %arg7[%c0_17, %c0_18], %20 {strides = array<i32>} : memref<1x128xf32, #tpu.memory_space<vmem>>, vector<1x128xf32>,
    } else {
    }
    %c0 = arith.constant 0 : index
    %c0_1 = arith.constant 0 : index
    %3 = vector.load %arg1[%c0, %c0_1] : memref<16x128xf32, #tpu.memory_space<vmem>>, vector<16x128xf32>
    %c0_2 = arith.constant 0 : index
    %c0_3 = arith.constant 0 : index
    %4 = vector.load %arg6[%c0_2, %c0_3] : memref<1x128xf32, #tpu.memory_space<vmem>>, vector<1x128xf32>
    %cst = arith.constant dense<0.000000e+00> : vector<128xf32>
    %5 = vector.multi_reduction <add>, %3, %cst [0] : vector<16x128xf32> to vector<128xf32>
    %6 = vector.shape_cast %5 : vector<128xf32> to vector<1x128xf32>
    %7 = arith.addf %4, %6 : vector<1x128xf32>
    %c0_4 = arith.constant 0 : index
    %c0_5 = arith.constant 0 : index
    %8 = vector.load %arg6[%c0_4, %c0_5] : memref<1x128xf32, #tpu.memory_space<vmem>>, vector<1x128xf32>
    tpu.vector_store %arg6[%c0_4, %c0_5], %7 {strides = array<i32>} : memref<1x128xf32, #tpu.memory_space<vmem>>, vector<1x128xf32>,
    %c0_6 = arith.constant 0 : index
    %c0_7 = arith.constant 0 : index
    %9 = vector.load %arg7[%c0_6, %c0_7] : memref<1x128xf32, #tpu.memory_space<vmem>>, vector<1x128xf32>
    %10 = arith.mulf %3, %3 : vector<16x128xf32>
    %cst_8 = arith.constant dense<0.000000e+00> : vector<128xf32>
    %11 = vector.multi_reduction <add>, %10, %cst_8 [0] : vector<16x128xf32> to vector<128xf32>
    %12 = vector.shape_cast %11 : vector<128xf32> to vector<1x128xf32>
    %13 = arith.addf %9, %12 : vector<1x128xf32>
    %c0_9 = arith.constant 0 : index
    %c0_10 = arith.constant 0 : index
    %14 = vector.load %arg7[%c0_9, %c0_10] : memref<1x128xf32, #tpu.memory_space<vmem>>, vector<1x128xf32>
    tpu.vector_store %arg7[%c0_9, %c0_10], %13 {strides = array<i32>} : memref<1x128xf32, #tpu.memory_space<vmem>>, vector<1x128xf32>,
    %c0_i32_11 = arith.constant 0 : i32
    %15 = arith.cmpi eq, %arg0, %c0_i32_11 : i32
    %16 = arith.extui %15 : i1 to i32
    %c0_i32_12 = arith.constant 0 : i32
    %17 = arith.cmpi ne, %16, %c0_i32_12 : i32
    scf.if %17 {
      %c0_13 = arith.constant 0 : index
      %c0_14 = arith.constant 0 : index
      %18 = vector.load %arg6[%c0_13, %c0_14] : memref<1x128xf32, #tpu.memory_space<vmem>>, vector<1x128xf32>
      %c0_15 = arith.constant 0 : index
      %c0_16 = arith.constant 0 : index
      %19 = vector.load %arg7[%c0_15, %c0_16] : memref<1x128xf32, #tpu.memory_space<vmem>>, vector<1x128xf32>
      %c32_i32 = arith.constant 32 : i32
      %20 = tpu.dynamic_rotate %18 by %c32_i32 dim 1 : vector<1x128xf32>, i32 -> vector<1x128xf32>
      %21 = arith.addf %18, %20 : vector<1x128xf32>
      %c32_i32_17 = arith.constant 32 : i32
      %22 = tpu.dynamic_rotate %19 by %c32_i32_17 dim 1 : vector<1x128xf32>, i32 -> vector<1x128xf32>
      %23 = arith.addf %19, %22 : vector<1x128xf32>
      %c64_i32 = arith.constant 64 : i32
      %24 = tpu.dynamic_rotate %18 by %c64_i32 dim 1 : vector<1x128xf32>, i32 -> vector<1x128xf32>
      %25 = arith.addf %21, %24 : vector<1x128xf32>
      %c64_i32_18 = arith.constant 64 : i32
      %26 = tpu.dynamic_rotate %19 by %c64_i32_18 dim 1 : vector<1x128xf32>, i32 -> vector<1x128xf32>
      %27 = arith.addf %23, %26 : vector<1x128xf32>
      %c96_i32 = arith.constant 96 : i32
      %28 = tpu.dynamic_rotate %18 by %c96_i32 dim 1 : vector<1x128xf32>, i32 -> vector<1x128xf32>
      %29 = arith.addf %25, %28 : vector<1x128xf32>
      %c96_i32_19 = arith.constant 96 : i32
      %30 = tpu.dynamic_rotate %19 by %c96_i32_19 dim 1 : vector<1x128xf32>, i32 -> vector<1x128xf32>
      %31 = arith.addf %27, %30 : vector<1x128xf32>
      %cst_20 = arith.constant 1.562500e-02 : f32
      %32 = vector.broadcast %cst_20 : f32 to vector<1x128xf32>
      %33 = arith.mulf %29, %32 : vector<1x128xf32>
      %cst_21 = arith.constant 1.562500e-02 : f32
      %34 = vector.broadcast %cst_21 : f32 to vector<1x128xf32>
      %35 = arith.mulf %31, %34 : vector<1x128xf32>
      %36 = arith.mulf %33, %33 : vector<1x128xf32>
      %37 = arith.subf %35, %36 : vector<1x128xf32>
      %cst_22 = arith.constant 9.99999974E-6 : f32
      %38 = vector.broadcast %cst_22 : f32 to vector<1x128xf32>
      %39 = arith.addf %37, %38 : vector<1x128xf32>
      %40 = math.rsqrt %39 : vector<1x128xf32>
      %c0_23 = arith.constant 0 : index
      %c0_24 = arith.constant 0 : index
      %41 = vector.load %arg2[%c0_23, %c0_24] : memref<1x128xf32, #tpu.memory_space<vmem>>, vector<1x128xf32>
      %42 = arith.mulf %41, %40 : vector<1x128xf32>
      %c0_25 = arith.constant 0 : index
      %c0_26 = arith.constant 0 : index
      %43 = vector.load %arg4[%c0_25, %c0_26] : memref<1x128xf32, #tpu.memory_space<vmem>>, vector<1x128xf32>
      tpu.vector_store %arg4[%c0_25, %c0_26], %42 {strides = array<i32>} : memref<1x128xf32, #tpu.memory_space<vmem>>, vector<1x128xf32>,
      %c0_27 = arith.constant 0 : index
      %c0_28 = arith.constant 0 : index
      %44 = vector.load %arg3[%c0_27, %c0_28] : memref<1x128xf32, #tpu.memory_space<vmem>>, vector<1x128xf32>
      %45 = arith.mulf %33, %42 : vector<1x128xf32>
      %46 = arith.subf %44, %45 : vector<1x128xf32>
      %c0_29 = arith.constant 0 : index
      %c0_30 = arith.constant 0 : index
      %47 = vector.load %arg5[%c0_29, %c0_30] : memref<1x128xf32, #tpu.memory_space<vmem>>, vector<1x128xf32>
      tpu.vector_store %arg5[%c0_29, %c0_30], %46 {strides = array<i32>} : memref<1x128xf32, #tpu.memory_space<vmem>>, vector<1x128xf32>,
    } else {
    }
    return
  }
  func.func @transform_0(%arg0: i32) -> (i32, i32) {
    %c0_i32 = arith.constant 0 : i32
    %c0_i32_0 = arith.constant 0 : i32
    return %arg0, %c0_i32 : i32, i32
  }
  func.func @transform_1(%arg0: i32) -> (i32, i32) {
    %c0_i32 = arith.constant 0 : i32
    %c0_i32_0 = arith.constant 0 : i32
    %c0_i32_1 = arith.constant 0 : i32
    return %c0_i32, %c0_i32_0 : i32, i32
  }
  func.func @transform_2(%arg0: i32) -> (i32, i32) {
    %c0_i32 = arith.constant 0 : i32
    %c0_i32_0 = arith.constant 0 : i32
    %c0_i32_1 = arith.constant 0 : i32
    return %c0_i32, %c0_i32_0 : i32, i32
  }
  func.func @transform_3(%arg0: i32) -> (i32, i32) {
    %c0_i32 = arith.constant 0 : i32
    %c0_i32_0 = arith.constant 0 : i32
    %c0_i32_1 = arith.constant 0 : i32
    return %c0_i32, %c0_i32_0 : i32, i32
  }
  func.func @transform_4(%arg0: i32) -> (i32, i32) {
    %c0_i32 = arith.constant 0 : i32
    %c0_i32_0 = arith.constant 0 : i32
    %c0_i32_1 = arith.constant 0 : i32
    return %c0_i32, %c0_i32_0 : i32, i32
  }
}

module attributes {stable_mosaic.version = 11 : i64} {
  func.func @_apply_kernel(%arg0: i32, %arg1: memref<16x128xf32, #tpu.memory_space<vmem>>, %arg2: memref<1x128xf32, #tpu.memory_space<vmem>>, %arg3: memref<1x128xf32, #tpu.memory_space<vmem>>, %arg4: memref<16x128xf32, #tpu.memory_space<vmem>>) attributes {dimension_semantics = [#tpu.dimension_semantics<parallel>], iteration_bounds = array<i64: 1>, scalar_prefetch = 0 : i64, scratch_operands = 0 : i64, tpu.core_type = #tpu.core_type<tc>, window_params = [{transform_indices = @transform_0, window_bounds = array<i64: 16, 128>}, {pipeline_mode = #tpu.pipeline_mode<synchronous>, transform_indices = @transform_1, window_bounds = array<i64: 1, 128>}, {pipeline_mode = #tpu.pipeline_mode<synchronous>, transform_indices = @transform_2, window_bounds = array<i64: 1, 128>}, {transform_indices = @transform_3, window_bounds = array<i64: 16, 128>}]} {
    %c0 = arith.constant 0 : index
    %c0_0 = arith.constant 0 : index
    %0 = vector.load %arg1[%c0, %c0_0] : memref<16x128xf32, #tpu.memory_space<vmem>>, vector<16x128xf32>
    %c0_1 = arith.constant 0 : index
    %c0_2 = arith.constant 0 : index
    %1 = vector.load %arg2[%c0_1, %c0_2] : memref<1x128xf32, #tpu.memory_space<vmem>>, vector<1x128xf32>
    %2 = vector.broadcast %1 : vector<1x128xf32> to vector<16x128xf32>
    %3 = arith.mulf %0, %2 : vector<16x128xf32>
    %c0_3 = arith.constant 0 : index
    %c0_4 = arith.constant 0 : index
    %4 = vector.load %arg3[%c0_3, %c0_4] : memref<1x128xf32, #tpu.memory_space<vmem>>, vector<1x128xf32>
    %5 = vector.broadcast %4 : vector<1x128xf32> to vector<16x128xf32>
    %6 = arith.addf %3, %5 : vector<16x128xf32>
    %c0_5 = arith.constant 0 : index
    %c0_6 = arith.constant 0 : index
    %7 = vector.load %arg4[%c0_5, %c0_6] : memref<16x128xf32, #tpu.memory_space<vmem>>, vector<16x128xf32>
    tpu.vector_store %arg4[%c0_5, %c0_6], %6 {strides = array<i32>} : memref<16x128xf32, #tpu.memory_space<vmem>>, vector<16x128xf32>,
    return
  }
  func.func @transform_0(%arg0: i32) -> (i32, i32) {
    %c0_i32 = arith.constant 0 : i32
    %c0_i32_0 = arith.constant 0 : i32
    return %arg0, %c0_i32 : i32, i32
  }
  func.func @transform_1(%arg0: i32) -> (i32, i32) {
    %c0_i32 = arith.constant 0 : i32
    %c0_i32_0 = arith.constant 0 : i32
    %c0_i32_1 = arith.constant 0 : i32
    return %c0_i32, %c0_i32_0 : i32, i32
  }
  func.func @transform_2(%arg0: i32) -> (i32, i32) {
    %c0_i32 = arith.constant 0 : i32
    %c0_i32_0 = arith.constant 0 : i32
    %c0_i32_1 = arith.constant 0 : i32
    return %c0_i32, %c0_i32_0 : i32, i32
  }
  func.func @transform_3(%arg0: i32) -> (i32, i32) {
    %c0_i32 = arith.constant 0 : i32
    %c0_i32_0 = arith.constant 0 : i32
    return %arg0, %c0_i32 : i32, i32
  }
}

</mosaic_0001>

<llo_original>
// kernel: bnview_forward.2
$region0: #{bnview_forward.2}
  #allocation0 [shape = 'u32[]', space=smem, size = 0x4, offset = 0x4, fixed_abs, tag = 'smem constant byte address 0x4 - core index']
  #allocation1 [shape = 'u32[144,128]{1,0:T(1,128)}', space=vmem, size = 0x12000, scoped, tag = 'internal scratch']
  #allocation2 [shape = 'f32[1,128]{1,0:T(1,128)}', space=vmem, size = 0x200, scoped, tag = 'scratch operand']
  #allocation3 [shape = 'f32[1,128]{1,0:T(1,128)}', space=vmem, size = 0x200, scoped, tag = 'scratch operand']
  %s0 = inlined_call_operand.vmem [shape: f32[16,128], index: 0, kind: input, shape index: {}]
  %s1 = inlined_call_operand.vmem [shape: f32[1,128], index: 1, kind: input, shape index: {}]
  %s2 = inlined_call_operand.vmem [shape: f32[1,128], index: 2, kind: input, shape index: {}]
  %s3 = inlined_call_operand.vmem [shape: f32[1,128], index: 3, kind: output, shape index: {0}]
  %s4 = inlined_call_operand.vmem [shape: f32[1,128], index: 4, kind: output, shape index: {1}]
  %5 = xla_tuple %s3, %s4
  %s6 = sld [smem:[#allocation0]]
  $region38: #{bnview_forward.2} parent=0
    _
  %s8 = ssub.s32 1, %s6
  %s9 = scalar_select 0, %s8, %s6
  // Predicated region
  $region2: #{bnview_forward.2} parent=0 // pred_check
    _
  $region3: #{bnview_forward.2} parent=0 // pred_check_branch
    %11 = sbr.rel (0) target = $region5
  $region4: #{bnview_forward.2} parent=0 // pred_region
    _
  $region5: #{bnview_forward.2} parent=0 // pred_fallthru
    _
  // Predicated region
  $region6: #{bnview_forward.2} parent=0 // pred_check
    _
  $region7: #{bnview_forward.2} parent=0 // pred_check_branch
    %13 = sbr.rel (0) target = $region9
  $region8: #{bnview_forward.2} parent=0 // pred_region
    _
  $region9: #{bnview_forward.2} parent=0 // pred_fallthru
    _
  // Predicated region
  $region10: #{bnview_forward.2} parent=0 // pred_check
    _
  $region11: #{bnview_forward.2} parent=0 // pred_check_branch
    %15 = sbr.rel (0) target = $region13
  $region12: #{bnview_forward.2} parent=0 // pred_region
    _
  $region13: #{bnview_forward.2} parent=0 // pred_fallthru
    _
  %p16 = scmp.eq.s32.totalorder 0, 0
  // Predicated region
  $region14: #{bnview_forward.2} parent=0 // pred_check
    %p17 = pneg %p16
  $region15: #{bnview_forward.2} parent=0 // pred_check_branch
    %19 = sbr.rel (%p17) target = $region17
  $region16: #{bnview_forward.2} parent=0 // pred_region
    %20 = vst [vmem:[#allocation2] sm:$0x1] 0.0
    %21 = vst [vmem:[#allocation3] sm:$0x1] 0.0
  $region17: #{bnview_forward.2} parent=0 // pred_fallthru
    _
  %v22 = vld [vmem:[%s0] sm:$0xff]
  %v23 = vld [vmem:[%s0 + $0x8] sm:$0xff]
  %v24 = vld [vmem:[#allocation2] sm:$0x1]
  %v25 = vadd.f32 %v22, %v23
  %v26 = vrot.slane %v25, 4
  %v27 = vadd.f32 %v25, %v26
  %v28 = vrot.slane %v27, 2
  %v29 = vadd.f32 %v27, %v28
  %v30 = vrot.slane %v29, 1
  %v31 = vadd.f32 %v29, %v30
  %v32 = vadd.f32 %v24, %v31
  %33 = vst [vmem:[#allocation2] sm:$0x1] %v32
  %v34 = vld [vmem:[#allocation3] sm:$0x1]
  %v35 = vmul.f32 %v22, %v22
  %v36 = vmul.f32 %v23, %v23
  %v37 = vadd.f32 %v35, %v36
  %v38 = vrot.slane %v37, 4
  %v39 = vadd.f32 %v37, %v38
  %v40 = vrot.slane %v39, 2
  %v41 = vadd.f32 %v39, %v40
  %v42 = vrot.slane %v41, 1
  %v43 = vadd.f32 %v41, %v42
  %v44 = vadd.f32 %v34, %v43
  %45 = vst [vmem:[#allocation3] sm:$0x1] %v44
  // Predicated region
  $region18: #{bnview_forward.2} parent=0 // pred_check
    %p46 = pneg %p16
  $region19: #{bnview_forward.2} parent=0 // pred_check_branch
    %48 = sbr.rel (%p46) target = $region21
  $region20: #{bnview_forward.2} parent=0 // pred_region
    %v49 = vld [vmem:[#allocation2] sm:$0x1]
    %v50 = vld [vmem:[#allocation3] sm:$0x1]
    %51 = vrot.lane.b32.xlu0 %v49, 32
    %v52 = vpop.permute.xlu0 %51
    %v53 = vadd.f32 %v49, %v52
    %54 = vrot.lane.b32.xlu0 %v50, 32
    %v55 = vpop.permute.xlu0 %54
    %v56 = vadd.f32 %v50, %v55
    %57 = vrot.lane.b32.xlu0 %v49, 64
    %v58 = vpop.permute.xlu0 %57
    %v59 = vadd.f32 %v53, %v58
    %60 = vrot.lane.b32.xlu0 %v50, 64
    %v61 = vpop.permute.xlu0 %60
    %v62 = vadd.f32 %v56, %v61
    %63 = vrot.lane.b32.xlu0 %v49, 96
    %v64 = vpop.permute.xlu0 %63
    %v65 = vadd.f32 %v59, %v64
    %66 = vrot.lane.b32.xlu0 %v50, 96
    %v67 = vpop.permute.xlu0 %66
    %v68 = vadd.f32 %v62, %v67
    %v69 = vmul.f32 %v65, 0.015625
    %v70 = vmul.f32 %v68, 0.015625
    %v71 = vmul.f32 %v69, %v69
    %v72 = vsub.f32 %v70, %v71
    %v73 = vadd.f32 %v72, 1e-05
    %v74 = vrsqrt.pop %v73
    %v75 = vld [vmem:[%s1] sm:$0x1]
    %v76 = vmul.f32 %v75, %v74
    %77 = vst [vmem:[%s3] sm:$0x1] %v76
    %v78 = vld [vmem:[%s2] sm:$0x1]
    %v79 = vmul.f32 %v69, %v76
    %v80 = vsub.f32 %v78, %v79
    %81 = vst [vmem:[%s4] sm:$0x1] %v80
  $region21: #{bnview_forward.2} parent=0 // pred_fallthru
    _
  // Predicated region
  $region22: #{bnview_forward.2} parent=0 // pred_check
    _
  $region23: #{bnview_forward.2} parent=0 // pred_check_branch
    %83 = sbr.rel (0) target = $region25
  $region24: #{bnview_forward.2} parent=0 // pred_region
    _
  $region25: #{bnview_forward.2} parent=0 // pred_fallthru
    _
  // Predicated region
  $region26: #{bnview_forward.2} parent=0 // pred_check
    _
  $region27: #{bnview_forward.2} parent=0 // pred_check_branch
    %85 = sbr.rel (0) target = $region29
  $region28: #{bnview_forward.2} parent=0 // pred_region
    _
  $region29: #{bnview_forward.2} parent=0 // pred_fallthru
    _
  // Predicated region
  $region30: #{bnview_forward.2} parent=0 // pred_check
    _
  $region31: #{bnview_forward.2} parent=0 // pred_check_branch
    %87 = sbr.rel (0) target = $region33
  $region32: #{bnview_forward.2} parent=0 // pred_region
    _
  $region33: #{bnview_forward.2} parent=0 // pred_fallthru
    _
  // Predicated region
  $region34: #{bnview_forward.2} parent=0 // pred_check
    _
  $region35: #{bnview_forward.2} parent=0 // pred_check_branch
    %89 = sbr.rel (0) target = $region37
  $region36: #{bnview_forward.2} parent=0 // pred_region
    _
  $region37: #{bnview_forward.2} parent=0 // pred_fallthru
    _

// kernel: bnview_forward.3
$region0: #{bnview_forward.3}
  #allocation0 [shape = 'u32[]', space=smem, size = 0x4, offset = 0x4, fixed_abs, tag = 'smem constant byte address 0x4 - core index']
  #allocation1 [shape = 'u32[144,128]{1,0:T(1,128)}', space=vmem, size = 0x12000, scoped, tag = 'internal scratch']
  %s0 = inlined_call_operand.vmem [shape: f32[16,128], index: 0, kind: input, shape index: {}]
  %s1 = inlined_call_operand.vmem [shape: f32[1,128], index: 1, kind: input, shape index: {}]
  %s2 = inlined_call_operand.vmem [shape: f32[1,128], index: 2, kind: input, shape index: {}]
  %s3 = inlined_call_operand.vmem [shape: f32[16,128], index: 3, kind: output, shape index: {}]
  %s4 = sld [smem:[#allocation0]]
  $region22: #{bnview_forward.3} parent=0
    _
  %s6 = ssub.s32 1, %s4
  %s7 = scalar_select 0, %s6, %s4
  // Predicated region
  $region2: #{bnview_forward.3} parent=0 // pred_check
    _
  $region3: #{bnview_forward.3} parent=0 // pred_check_branch
    %9 = sbr.rel (0) target = $region5
  $region4: #{bnview_forward.3} parent=0 // pred_region
    _
  $region5: #{bnview_forward.3} parent=0 // pred_fallthru
    _
  // Predicated region
  $region6: #{bnview_forward.3} parent=0 // pred_check
    _
  $region7: #{bnview_forward.3} parent=0 // pred_check_branch
    %11 = sbr.rel (0) target = $region9
  $region8: #{bnview_forward.3} parent=0 // pred_region
    _
  $region9: #{bnview_forward.3} parent=0 // pred_fallthru
    _
  // Predicated region
  $region10: #{bnview_forward.3} parent=0 // pred_check
    _
  $region11: #{bnview_forward.3} parent=0 // pred_check_branch
    %13 = sbr.rel (0) target = $region13
  $region12: #{bnview_forward.3} parent=0 // pred_region
    _
  $region13: #{bnview_forward.3} parent=0 // pred_fallthru
    _
  %v14 = vld [vmem:[%s0] sm:$0xff]
  %v15 = vld [vmem:[%s0 + $0x8] sm:$0xff]
  %v16 = vld [vmem:[%s1] sm:$0x1]
  %v18 = vlaneseq
  %v19 = vshrl.u32 %v18, 7
  %v20 = vsub.s32 0, %v19
  %v21 = vrot.slane %v16, %v20
  %v23 = vmul.f32 %v14, %v21
  %v24 = vmul.f32 %v15, %v21
  %v25 = vld [vmem:[%s2] sm:$0x1]
  %v27 = vlaneseq
  %v28 = vshrl.u32 %v27, 7
  %v29 = vsub.s32 0, %v28
  %v30 = vrot.slane %v25, %v29
  %v32 = vadd.f32 %v23, %v30
  %v33 = vadd.f32 %v24, %v30
  %34 = vst [vmem:[%s3] sm:$0xff] %v32
  %35 = vst [vmem:[%s3 + $0x8] sm:$0xff] %v33
  // Predicated region
  $region14: #{bnview_forward.3} parent=0 // pred_check
    _
  $region15: #{bnview_forward.3} parent=0 // pred_check_branch
    %37 = sbr.rel (0) target = $region17
  $region16: #{bnview_forward.3} parent=0 // pred_region
    _
  $region17: #{bnview_forward.3} parent=0 // pred_fallthru
    _
  // Predicated region
  $region18: #{bnview_forward.3} parent=0 // pred_check
    _
  $region19: #{bnview_forward.3} parent=0 // pred_check_branch
    %39 = sbr.rel (0) target = $region21
  $region20: #{bnview_forward.3} parent=0 // pred_region
    _
  $region21: #{bnview_forward.3} parent=0 // pred_fallthru
    _

</llo_original>
